<compile_context>
chip_gen: v5e
topology: v5e:2x2
jax: 0.10.0
libtpu: 0.0.40
codegen_flags: <defaults>
</compile_context>

<pallas_src>
import functools

import jax
import jax.numpy as jnp
from jax.experimental import pallas as pl
from jax.experimental.pallas import tpu as pltpu


def _round_up(a: int, b: int) -> int:
    return ((a + b - 1) // b) * b


_PER_BUFFER_CAP_BYTES = 12 * 1024 * 1024  # upper bound per pipelined input buffer


def _vmem_capacity_bytes() -> int:
    """Physical VMEM of the current TPU generation (conservative fallback)."""
    try:
        return int(pltpu.get_tpu_info().vmem_capacity_bytes)
    except Exception:
        return 64 * 1024 * 1024  # v7x per-core figure; safe for all generations


def _choose_tiles(num_rows: int, hw: int, itemsize: int, budget: int):
    """Pick (RT, HT, T, KT, need_mask) using PADDED VMEM block sizes."""
    row_align = 8 * max(1, 4 // itemsize)      # 8 f32, 16 bf16/f16, 32 int8/fp8
    lane_pad = max(128, _round_up(hw, 128))
    full_row_bytes = lane_pad * itemsize       # padded bytes of one full-HW row

    if row_align * full_row_bytes <= budget:
        # Whole spatial extent fits in one buffer -> single reduction step.
        ht = hw
        need_mask = False
        rt = (budget // full_row_bytes) // row_align * row_align
        rt = max(row_align, rt)
        # Prefer >= ~4 row blocks (>= 2 for small R): pipelining + v7x 2-TC sharding.
        if num_rows >= 4 * row_align:
            rt = min(rt, _round_up(pl.cdiv(num_rows, 4), row_align))
        elif num_rows >= 2 * row_align:
            rt = min(rt, _round_up(pl.cdiv(num_rows, 2), row_align))
    else:
        # Huge spatial map: tile the reduction axis (multiple of 128 lanes).
        rt = row_align * 8
        ht = (budget // (rt * itemsize)) // 128 * 128
        if ht < 128:
            rt = row_align
            ht = max(128, (budget // (rt * itemsize)) // 128 * 128)
        need_mask = (hw % ht) != 0

    if rt >= num_rows:
        rt = num_rows  # single full-extent row block (legal even if unaligned)

    grid_t = pl.cdiv(num_rows, rt)
    grid_k = pl.cdiv(hw, ht)
    return rt, ht, grid_t, grid_k, need_mask


def _spoc_kernel(x_ref, o_ref, acc_ref, *, inv_hw: float, hw: int, ht: int,
                 need_mask: bool):
    # x_ref: (RT, HT) tile; o_ref: (1, RT) lane-dense output row;
    # acc_ref: (1, RT) f32 accumulator persisting across the reduction axis.
    k = pl.program_id(1)

    @pl.when(k == 0)
    def _():
        acc_ref[...] = jnp.zeros_like(acc_ref)

    x = x_ref[...]
    if need_mask:  # static flag: only when KT > 1 and HT does not divide HW
        col = k * ht + jax.lax.broadcasted_iota(jnp.int32, x.shape, 1)
        x = jnp.where(col < hw, x, jnp.zeros((), x.dtype))
    acc_ref[...] += jnp.sum(x.astype(jnp.float32), axis=-1)[None, :]

    @pl.when(k == pl.num_programs(1) - 1)
    def _():
        o_ref[...] = (acc_ref[...] * inv_hw).astype(o_ref.dtype)


def spoc_pallas(x: jax.Array) -> jax.Array:
    """SPoC / global average pooling. x: (B, C, *spatial) -> (B, C)."""
    assert x.ndim >= 3, f"expected (B, C, spatial...), got {x.shape}"
    B, C = x.shape[0], x.shape[1]
    HW = 1
    for d in x.shape[2:]:
        HW *= d
    assert HW > 0

    R = B * C
    xf = x.reshape(R, HW)                      # free reshape, spatial on lanes
    itemsize = jnp.dtype(x.dtype).itemsize

    vmem_cap = _vmem_capacity_bytes()
    per_buffer_budget = min(_PER_BUFFER_CAP_BYTES, vmem_cap // 8)
    RT, HT, T, KT, need_mask = _choose_tiles(R, HW, itemsize, per_buffer_budget)
    inv_hw = 1.0 / float(HW)

    # Padded VMEM footprint: double-buffered input + output blocks + scratch.
    in_block_bytes = _round_up(RT, 8) * max(128, _round_up(HT, 128)) * itemsize
    out_block_bytes = 8 * max(128, _round_up(RT, 128)) * itemsize
    acc_bytes = 8 * max(128, _round_up(RT, 128)) * 4
    footprint = 2 * in_block_bytes + 2 * out_block_bytes + acc_bytes
    vmem_limit = int(min(vmem_cap * 3 // 4,
                         max(32 * 1024 * 1024, footprint + 4 * 1024 * 1024)))

    kernel = functools.partial(_spoc_kernel, inv_hw=inv_hw, hw=HW, ht=HT,
                               need_mask=need_mask)
    out2d = pl.pallas_call(
        kernel,
        out_shape=jax.ShapeDtypeStruct((T, RT), x.dtype),
        grid=(T, KT),
        in_specs=[pl.BlockSpec((RT, HT), lambda i, k: (i, k))],
        out_specs=pl.BlockSpec((1, RT), lambda i, k: (i, 0)),
        scratch_shapes=[pltpu.VMEM((1, RT), jnp.float32)],
        compiler_params=pltpu.CompilerParams(
            dimension_semantics=("parallel", "arbitrary"),
            vmem_limit_bytes=vmem_limit,
        ),
        cost_estimate=pl.CostEstimate(
            flops=R * HW + R,                  # adds + final scale
            transcendentals=0,
            bytes_accessed=R * HW * itemsize + R * itemsize,
        ),
    )(xf)
    # Flattened row order matches input rows; drop padded tail rows (if any).
    return out2d.reshape(-1)[:R].reshape(B, C)


def spoc_reference(x: jax.Array) -> jax.Array:
    """Pure-JAX reference mirroring the PyTorch _spoc() (mean over spatial)."""
    B, C = x.shape[0], x.shape[1]
    xf = x.reshape(B, C, -1).astype(jnp.float32)
    return jnp.mean(xf, axis=-1).astype(x.dtype)


if __name__ == "__main__":
    key = jax.random.PRNGKey(0)

    # Main test (module-consistent small shape).
    B, C, H, W = 2, 4, 16, 16
    x = jax.random.normal(key, (B, C, H, W), dtype=jnp.float32)
    out = jax.block_until_ready(spoc_pallas(x))
    ref = spoc_reference(x)
    assert out.shape == (B, C), out.shape
    assert jnp.allclose(out, ref, atol=1e-5, rtol=1e-5), (out, ref)

    # Awkward row count / non-128-aligned spatial extent (ResNet-head-like).
    k2 = jax.random.fold_in(key, 1)
    x2 = jax.random.normal(k2, (3, 5, 7, 7), dtype=jnp.float32)
    out2 = jax.block_until_ready(spoc_pallas(x2))
    ref2 = spoc_reference(x2)
    assert out2.shape == (3, 5), out2.shape
    assert jnp.allclose(out2, ref2, atol=1e-5, rtol=1e-5), (out2, ref2)

    # bf16 path (dtype-aware row alignment).
    k3 = jax.random.fold_in(key, 2)
    x3 = jax.random.normal(k3, (2, 8, 14, 14), dtype=jnp.bfloat16)
    out3 = jax.block_until_ready(spoc_pallas(x3))
    ref3 = spoc_reference(x3)
    assert out3.shape == (2, 8), out3.shape
    assert jnp.allclose(out3.astype(jnp.float32), ref3.astype(jnp.float32),
                        atol=1e-2, rtol=1e-2), (out3, ref3)

    print("KERNEL_OK")
</pallas_src>

<mosaic_0001>
module attributes {stable_mosaic.version = 11 : i64} {
  func.func @_spoc_kernel(%arg0: i32, %arg1: i32, %arg2: memref<8x256xf32, #tpu.memory_space<vmem>>, %arg3: memref<1x8xf32, #tpu.memory_space<vmem>>, %arg4: memref<1x8xf32, #tpu.memory_space<vmem>>) attributes {dimension_semantics = [#tpu.dimension_semantics<parallel>, #tpu.dimension_semantics<arbitrary>], iteration_bounds = array<i64: 1, 1>, scalar_prefetch = 0 : i64, scratch_operands = 1 : i64, tpu.core_type = #tpu.core_type<tc>, window_params = [{transform_indices = @transform_0, window_bounds = array<i64: 8, 256>}, {transform_indices = @transform_1, window_bounds = array<i64: 1, 8>}]} {
    %c0_i32 = arith.constant 0 : i32
    %0 = arith.cmpi eq, %arg1, %c0_i32 : i32
    %1 = arith.extui %0 : i1 to i32
    %c0_i32_0 = arith.constant 0 : i32
    %2 = arith.cmpi ne, %1, %c0_i32_0 : i32
    scf.if %2 {
      %cst_8 = arith.constant 0.000000e+00 : f32
      %12 = vector.broadcast %cst_8 : f32 to vector<1x8xf32>
      %c0_9 = arith.constant 0 : index
      %c0_10 = arith.constant 0 : index
      %13 = vector.load %arg4[%c0_9, %c0_10] : memref<1x8xf32, #tpu.memory_space<vmem>>, vector<1x8xf32>
      tpu.vector_store %arg4[%c0_9, %c0_10], %12 {strides = array<i32>} : memref<1x8xf32, #tpu.memory_space<vmem>>, vector<1x8xf32>,
    } else {
    }
    %c0 = arith.constant 0 : index
    %c0_1 = arith.constant 0 : index
    %3 = vector.load %arg2[%c0, %c0_1] : memref<8x256xf32, #tpu.memory_space<vmem>>, vector<8x256xf32>
    %c0_2 = arith.constant 0 : index
    %c0_3 = arith.constant 0 : index
    %4 = vector.load %arg4[%c0_2, %c0_3] : memref<1x8xf32, #tpu.memory_space<vmem>>, vector<1x8xf32>
    %cst = arith.constant dense<0.000000e+00> : vector<8xf32>
    %5 = vector.multi_reduction <add>, %3, %cst [1] : vector<8x256xf32> to vector<8xf32>
    %6 = vector.shape_cast %5 : vector<8xf32> to vector<1x8xf32>
    %7 = arith.addf %4, %6 : vector<1x8xf32>
    %c0_4 = arith.constant 0 : index
    %c0_5 = arith.constant 0 : index
    %8 = vector.load %arg4[%c0_4, %c0_5] : memref<1x8xf32, #tpu.memory_space<vmem>>, vector<1x8xf32>
    tpu.vector_store %arg4[%c0_4, %c0_5], %7 {strides = array<i32>} : memref<1x8xf32, #tpu.memory_space<vmem>>, vector<1x8xf32>,
    %c0_i32_6 = arith.constant 0 : i32
    %9 = arith.cmpi eq, %arg1, %c0_i32_6 : i32
    %10 = arith.extui %9 : i1 to i32
    %c0_i32_7 = arith.constant 0 : i32
    %11 = arith.cmpi ne, %10, %c0_i32_7 : i32
    scf.if %11 {
      %c0_8 = arith.constant 0 : index
      %c0_9 = arith.constant 0 : index
      %12 = vector.load %arg4[%c0_8, %c0_9] : memref<1x8xf32, #tpu.memory_space<vmem>>, vector<1x8xf32>
      %cst_10 = arith.constant 3.906250e-03 : f32
      %13 = vector.broadcast %cst_10 : f32 to vector<1x8xf32>
      %14 = arith.mulf %12, %13 : vector<1x8xf32>
      %c0_11 = arith.constant 0 : index
      %c0_12 = arith.constant 0 : index
      %15 = vector.load %arg3[%c0_11, %c0_12] : memref<1x8xf32, #tpu.memory_space<vmem>>, vector<1x8xf32>
      tpu.vector_store %arg3[%c0_11, %c0_12], %14 {strides = array<i32>} : memref<1x8xf32, #tpu.memory_space<vmem>>, vector<1x8xf32>,
    } else {
    }
    return
  }
  func.func @transform_0(%arg0: i32, %arg1: i32) -> (i32, i32) {
    %c0_i32 = arith.constant 0 : i32
    return %arg0, %arg1 : i32, i32
  }
  func.func @transform_1(%arg0: i32, %arg1: i32) -> (i32, i32) {
    %c0_i32 = arith.constant 0 : i32
    %c0_i32_0 = arith.constant 0 : i32
    return %arg0, %c0_i32 : i32, i32
  }
}

</mosaic_0001>

<llo_original>
// kernel: tpu_custom_call.1
$region0: #{tpu_custom_call.1}
  #allocation0 [shape = 'u32[]', space=smem, size = 0x4, offset = 0x4, fixed_abs, tag = 'smem constant byte address 0x4 - core index']
  #allocation1 [shape = 'u32[72,128]{1,0:T(1,128)}', space=vmem, size = 0x9000, scoped, tag = 'internal scratch']
  #allocation2 [shape = 'f32[1,8]{1,0:T(1,128)}', space=vmem, size = 0x200, scoped, tag = 'scratch operand']
  %s0 = inlined_call_operand.hbm [shape: f32[8,256], index: 0, kind: input, shape index: {}]
  %s1 = inlined_call_operand.hbm [shape: f32[1,8], index: 1, kind: output, shape index: {}]
  %s2 = sld [smem:[#allocation0]]
  $region26: #{tpu_custom_call.1} parent=0
    _
  %s4 = ssub.s32 1, %s2
  %s5 = scalar_select 0, %s4, %s2
  $region1: #{tpu_custom_call.1} parent=0
    #allocation3 [shape = 'u8[8192]{0}', space=vmem, size = 0x2000, scoped, tag = 'input window, operand 0, single buffered']
    #allocation4 [shape = 's32[1]{0}', space=sflag, size = 0x4, scoped, tag = 'scoped memory for tpu_custom_call.1']
    #allocation5 [shape = 's32[1]{0}', space=sflag, size = 0x4, scoped, tag = 'scoped memory for tpu_custom_call.1']
    #allocation6 [shape = 'u8[512]{0}', space=vmem, size = 0x400, scoped, tag = 'output window, operand 0, single buffered']
    %6 = vsyncpa [#allocation4], 0
    %7 = vsyncpa [#allocation5], 0
    // Predicated region
    $region2: #{tpu_custom_call.1} parent=1 // pred_check
      _
    $region3: #{tpu_custom_call.1} parent=1 // pred_check_branch
      %9 = sbr.rel (0) target = $region5
    $region4: #{tpu_custom_call.1} parent=1 // pred_region
      %11 = vsyncadd [#allocation4], 0
      %s13 = sshll.u32 %s0, 4
      %s14 = int_to_ptr.hbm [resolvable:$true] %s13
      %s15 = sshll.u32 [#allocation3], 4
      %s16 = int_to_ptr.vmem [resolvable:$true] %s15
      %18 = dma.hbm_to_vmem [thread:$0]  %s14, 256, %s16, [#allocation4]
    $region5: #{tpu_custom_call.1} parent=1 // pred_fallthru
      _
    // Predicated region
    $region6: #{tpu_custom_call.1} parent=1 // pred_check
      _
    $region7: #{tpu_custom_call.1} parent=1 // pred_check_branch
      %20 = sbr.rel (0) target = $region9
    $region8: #{tpu_custom_call.1} parent=1 // pred_region
      %22 = dma.done [#allocation4], 256
    $region9: #{tpu_custom_call.1} parent=1 // pred_fallthru
      _
    %p23 = scmp.eq.s32.totalorder 0, 0
    // Predicated region
    $region10: #{tpu_custom_call.1} parent=1 // pred_check
      %p24 = pneg %p23
    $region11: #{tpu_custom_call.1} parent=1 // pred_check_branch
      %26 = sbr.rel (%p24) target = $region13
    $region12: #{tpu_custom_call.1} parent=1 // pred_region
      %vm27 = vcmask 57344
      %28 = vst.msk [vmem:[#allocation2] sm:$0x1] %vm27, 0.0
    $region13: #{tpu_custom_call.1} parent=1 // pred_fallthru
      _
    %v29 = vld [vmem:[#allocation3] sm:$0xff]
    %v30 = vld [vmem:[#allocation3 + $0x8] sm:$0xff]
    %v31 = vld [vmem:[#allocation2] sm:$0x1]
    %v32 = vadd.f32 %v29, %v30
    %33 = vadd.xlane.f32.xlu0 %v32
    %v34 = vpop.xlane.xlu0 %33
    %v36 = vperm.slane %v34, 0
    %v37 = vperm.slane %v34, 1
    %v38 = vperm.slane %v34, 2
    %v39 = vperm.slane %v34, 3
    %v40 = vperm.slane %v34, 4
    %v41 = vperm.slane %v34, 5
    %v42 = vperm.slane %v34, 6
    %v43 = vperm.slane %v34, 7
    %44 = vst [vmem:[#allocation1] ss:$9 sm:$0xff] %v36
    %s45 = scalar_lea.vmem [#allocation1], 1
    %46 = vst [vmem:[%s45] ss:$9 sm:$0xff] %v37
    %s47 = scalar_lea.vmem [#allocation1], 2
    %48 = vst [vmem:[%s47] ss:$9 sm:$0xff] %v38
    %s49 = scalar_lea.vmem [#allocation1], 3
    %50 = vst [vmem:[%s49] ss:$9 sm:$0xff] %v39
    %s51 = scalar_lea.vmem [#allocation1], 4
    %52 = vst [vmem:[%s51] ss:$9 sm:$0xff] %v40
    %s53 = scalar_lea.vmem [#allocation1], 5
    %54 = vst [vmem:[%s53] ss:$9 sm:$0xff] %v41
    %s55 = scalar_lea.vmem [#allocation1], 6
    %56 = vst [vmem:[%s55] ss:$9 sm:$0xff] %v42
    %s57 = scalar_lea.vmem [#allocation1], 7
    %58 = vst [vmem:[%s57] ss:$9 sm:$0xff] %v43
    %v59 = vld [vmem:[#allocation1] sm:$0xff]
    %60 = vset.pattern.permute.xlu0 0
    %61 = vperm.xlu0 %60, %v59
    %v62 = vpop.permute.xlu0 %61
    %v63 = vlaneseq
    %v64 = vand.u32 %v63, 127
    %v65 = vperm.slane %v62, %v64
    %v67 = vadd.f32 %v31, %v65
    %vm68 = vcmask 57344
    %69 = vst.msk [vmem:[#allocation2] sm:$0x1] %vm68, %v67
    // Predicated region
    $region14: #{tpu_custom_call.1} parent=1 // pred_check
      %p70 = pneg %p23
    $region15: #{tpu_custom_call.1} parent=1 // pred_check_branch
      %72 = sbr.rel (%p70) target = $region17
    $region16: #{tpu_custom_call.1} parent=1 // pred_region
      %v73 = vld [vmem:[#allocation2] sm:$0x1]
      %v74 = vmul.f32 %v73, 0.00390625
      %75 = vst.msk [vmem:[#allocation6] sm:$0x1] %vm68, %v74
    $region17: #{tpu_custom_call.1} parent=1 // pred_fallthru
      _
    // Predicated region
    $region18: #{tpu_custom_call.1} parent=1 // pred_check
      _
    $region19: #{tpu_custom_call.1} parent=1 // pred_check_branch
      %77 = sbr.rel (0) target = $region21
    $region20: #{tpu_custom_call.1} parent=1 // pred_region
      %79 = vsyncadd [#allocation5], 0
      %s81 = sshll.u32 [#allocation6], 4
      %s82 = int_to_ptr.vmem [resolvable:$true] %s81
      %s83 = sshll.u32 %s1, 4
      %s84 = int_to_ptr.hbm [resolvable:$true] %s83
      %86 = dma.vmem_to_hbm [thread:$0]  %s82, 16, %s84, [#allocation5]
    $region21: #{tpu_custom_call.1} parent=1 // pred_fallthru
      _
    // Predicated region
    $region22: #{tpu_custom_call.1} parent=1 // pred_check
      _
    $region23: #{tpu_custom_call.1} parent=1 // pred_check_branch
      %88 = sbr.rel (0) target = $region25
    $region24: #{tpu_custom_call.1} parent=1 // pred_region
      %90 = dma.done [#allocation5], 16
    $region25: #{tpu_custom_call.1} parent=1 // pred_fallthru
      _
    %91 = vsyncpa [#allocation4], 1
    %92 = vsyncpa [#allocation5], 1

</llo_original>
